<compile_context>
chip_gen: v7x
topology: tpu7x:2x2x1
jax: 0.10.0
libtpu: 0.0.40
codegen_flags: <defaults>
</compile_context>

<pallas_src>
import functools

import jax
import jax.numpy as jnp
from jax import lax
from jax.experimental import pallas as pl
from jax.experimental.pallas import tpu as pltpu


def attention_kernel(x_ref, wqkv_ref, wproj_ref, bproj_ref, o_ref, hout_ref, *,
                     num_heads):
    """One batch element per grid step; everything resident in VMEM.

    x_ref:     (1, N, D) activations in the input dtype (cast to bf16 here).
    wqkv_ref:  (D, 3D)  bf16, q-columns pre-scaled by head_dim**-0.5.
    wproj_ref: (D, D)   bf16.
    bproj_ref: (1, D)   f32.
    o_ref:     (1, N, D) output (x's dtype).
    hout_ref:  (N, D)   bf16 VMEM scratch staging all head outputs.
    """
    x = x_ref[0].astype(jnp.bfloat16)          # cast activations in VMEM (VPU)
    wqkv = wqkv_ref[...]                       # (D, 3D) bf16
    wproj = wproj_ref[...]                     # (D, D)  bf16
    bproj = bproj_ref[...]                     # (1, D)  f32

    n, d_model = x.shape
    hd = d_model // num_heads

    # Fused QKV projection: bf16 x bf16 -> f32 MXU accumulation; cast the
    # result to bf16 once and slice q/k/v from this single buffer.
    qkv = jnp.dot(x, wqkv, preferred_element_type=jnp.float32)      # (N, 3D) f32
    qkv = qkv.astype(jnp.bfloat16)                                  # (N, 3D) bf16

    for h in range(num_heads):                 # static unrolled loop (small H)
        q0 = h * hd
        qh = qkv[:, q0:q0 + hd]                                     # pre-scaled q
        kh = qkv[:, d_model + q0:d_model + q0 + hd]
        vh = qkv[:, 2 * d_model + q0:2 * d_model + q0 + hd]

        # q @ k^T without an explicit transpose: contract the last dims.
        dots = lax.dot_general(qh, kh, (((1,), (1,)), ((), ())),
                               preferred_element_type=jnp.float32)  # (N, N) f32

        # Softmax with deferred normalization: unnormalized exp (in [0,1],
        # bf16-safe) feeds the p @ v matmul; divide the (N, hd) result instead
        # of the (N, N) score matrix.  attn_drop(p=0.0) is identity.
        m = jnp.max(dots, axis=-1, keepdims=True)
        e = jnp.exp(dots - m)                                       # (N, N) f32
        s = jnp.sum(e, axis=-1, keepdims=True)                      # (N, 1) f32
        head_un = jnp.dot(e.astype(jnp.bfloat16), vh,
                          preferred_element_type=jnp.float32)       # (N, hd) f32
        head_out = head_un * pl.reciprocal(s, approx=True)

        # Stage this head at lane offset h*hd -> merged 'b n (h d)' layout.
        hout_ref[:, q0:q0 + hd] = head_out.astype(jnp.bfloat16)

    # Single output projection with full contraction depth K = D, then bias.
    # proj_drop(p=0.0) is identity.
    out = jnp.dot(hout_ref[...], wproj, preferred_element_type=jnp.float32)
    o_ref[0] = (out + bproj).astype(o_ref.dtype)
    # TODO(synk): for long sequences (N >= ~512, esp. v7x 64 MiB VMEM) add a
    # q-tile grid axis with flash-style running max/sum over key blocks so the
    # (N, N) scores never fully materialize and both v7x TCs stay busy at small B.


def _vmem_cap_bytes():
    """~80% of this generation's physical VMEM (headroom for compiler scratch)."""
    try:
        return int(pltpu.get_tpu_info().vmem_capacity_bytes * 0.8)
    except Exception:
        # Hardware-info query unavailable -> conservative cap (safe on v7x too).
        return 48 * 2**20


def _vmem_bytes_estimate(N, D, x_bytes, out_bytes):
    """Per-grid-step live-set estimate for the kernel above."""
    weights = 2 * ((D * 3 * D + D * D) * 2 + D * 4)   # bf16 weights, 2 buffers
    io = 2 * N * D * (x_bytes + out_bytes)            # pipelined x / out blocks
    qkv = N * 3 * D * (4 + 2)                         # f32 dot result + bf16 copy
    per_head = N * N * (4 + 4 + 2)                    # dots f32, exp f32, exp bf16
    staged = N * D * (2 + 4)                          # hout bf16 scratch + proj f32
    return weights + io + qkv + per_head + staged


@functools.partial(jax.jit, static_argnames=("num_heads",))
def attention_forward(x, wqkv, wproj, bproj, *, num_heads):
    B, N, D = x.shape
    assert D % num_heads == 0, "embed dim must be divisible by num_heads"
    assert wqkv.shape == (D, 3 * D) and wproj.shape == (D, D)
    scale = (D // num_heads) ** (-0.5)

    # Fold the softmax scale into the q-columns of Wqkv (in f32, before the
    # bf16 cast); column order of Wqkv is (qkv, head, d).  Weights are reused
    # across the batch grid, so they are cast to bf16 here; activations stay
    # in their input dtype and are cast inside the kernel.
    wqkv_f32 = wqkv.astype(jnp.float32)
    wqkv_c = jnp.concatenate([wqkv_f32[:, :D] * scale, wqkv_f32[:, D:]],
                             axis=1).astype(jnp.bfloat16)
    wproj_c = wproj.astype(jnp.bfloat16)
    bproj_c = bproj.reshape(1, D).astype(jnp.float32)

    x_bytes = jnp.dtype(x.dtype).itemsize
    vmem_limit = int(min(
        max(2 * _vmem_bytes_estimate(N, D, x_bytes, x_bytes), 32 * 2**20),
        _vmem_cap_bytes()))

    kernel = functools.partial(attention_kernel, num_heads=num_heads)

    return pl.pallas_call(
        kernel,
        out_shape=jax.ShapeDtypeStruct((B, N, D), x.dtype),
        grid_spec=pltpu.PrefetchScalarGridSpec(
            num_scalar_prefetch=0,
            grid=(B,),
            in_specs=[
                pl.BlockSpec((1, N, D), lambda b: (b, 0, 0)),   # x: 1 batch/step
                pl.BlockSpec((D, 3 * D), lambda b: (0, 0)),     # Wqkv (q pre-scaled)
                pl.BlockSpec((D, D), lambda b: (0, 0)),         # Wproj
                pl.BlockSpec((1, D), lambda b: (0, 0)),         # bproj
            ],
            out_specs=pl.BlockSpec((1, N, D), lambda b: (b, 0, 0)),
            scratch_shapes=[pltpu.VMEM((N, D), jnp.bfloat16)],  # staged head outputs
        ),
        compiler_params=pltpu.CompilerParams(
            dimension_semantics=("parallel",),      # batch shards across TCs
            vmem_limit_bytes=vmem_limit,
        ),
    )(x, wqkv_c, wproj_c, bproj_c)


def attention_reference(x, wqkv, wproj, bproj, num_heads):
    """Pure-JAX (f32) reference matching the PyTorch forward semantics."""
    B, N, D = x.shape
    hd = D // num_heads
    scale = hd ** (-0.5)
    qkv = x @ wqkv                                             # (B, N, 3D)
    qkv = qkv.reshape(B, N, 3, num_heads, hd)                  # (qkv h d) order
    qkv = jnp.transpose(qkv, (2, 0, 3, 1, 4))                  # (3, B, H, N, hd)
    q, k, v = qkv[0], qkv[1], qkv[2]
    dots = jnp.einsum('bhid,bhjd->bhij', q, k) * scale
    attn = jax.nn.softmax(dots, axis=-1)
    out = jnp.einsum('bhij,bhjd->bhid', attn, v)               # (B, H, N, hd)
    out = jnp.transpose(out, (0, 2, 1, 3)).reshape(B, N, D)    # 'b h n d->b n (h d)'
    return out @ wproj + bproj.reshape(1, D)


if __name__ == "__main__":
    B, N, D = 2, 16, 64
    num_heads = 4          # head_dim = 16

    key = jax.random.PRNGKey(0)
    kx, kw1, kw2, kb = jax.random.split(key, 4)
    x = jax.random.normal(kx, (B, N, D), dtype=jnp.float32)
    # Linear stored as (in, out) so y = x @ W + b; Wqkv columns = (qkv, head, d).
    wqkv = jax.random.normal(kw1, (D, 3 * D), dtype=jnp.float32) * 0.05
    wproj = jax.random.normal(kw2, (D, D), dtype=jnp.float32) * 0.05
    bproj = jax.random.normal(kb, (1, D), dtype=jnp.float32) * 0.05

    out = attention_forward(x, wqkv, wproj, bproj, num_heads=num_heads)
    out = jax.block_until_ready(out)

    ref = attention_reference(x, wqkv, wproj, bproj, num_heads)
    assert out.shape == (B, N, D)
    err = float(jnp.max(jnp.abs(out - ref)))
    # bf16 matmul operands + approx reciprocal vs. an f32 reference.
    assert err < 5e-2, f"mismatch vs reference (max abs err {err})"

    print("KERNEL_OK")
</pallas_src>

<mosaic_0001>
module attributes {stable_mosaic.version = 11 : i64} {
  func.func @attention_kernel(%arg0: i32, %arg1: memref<1x16x64xf32, #tpu.memory_space<vmem>>, %arg2: memref<64x192xbf16, #tpu.memory_space<vmem>>, %arg3: memref<64x64xbf16, #tpu.memory_space<vmem>>, %arg4: memref<1x64xf32, #tpu.memory_space<vmem>>, %arg5: memref<1x16x64xf32, #tpu.memory_space<vmem>>, %arg6: memref<16x64xbf16, #tpu.memory_space<vmem>>) attributes {dimension_semantics = [#tpu.dimension_semantics<parallel>], iteration_bounds = array<i64: 2>, scalar_prefetch = 0 : i64, scratch_operands = 1 : i64, tpu.core_type = #tpu.core_type<tc>, window_params = [{transform_indices = @transform_0, window_bounds = array<i64: 1, 16, 64>}, {pipeline_mode = #tpu.pipeline_mode<synchronous>, transform_indices = @transform_1, window_bounds = array<i64: 64, 192>}, {pipeline_mode = #tpu.pipeline_mode<synchronous>, transform_indices = @transform_2, window_bounds = array<i64: 64, 64>}, {pipeline_mode = #tpu.pipeline_mode<synchronous>, transform_indices = @transform_3, window_bounds = array<i64: 1, 64>}, {transform_indices = @transform_4, window_bounds = array<i64: 1, 16, 64>}]} {
    %c0 = arith.constant 0 : index
    %c0_0 = arith.constant 0 : index
    %c0_1 = arith.constant 0 : index
    %0 = vector.load %arg1[%c0, %c0_0, %c0_1] : memref<1x16x64xf32, #tpu.memory_space<vmem>>, vector<1x16x64xf32>
    %1 = vector.shape_cast %0 : vector<1x16x64xf32> to vector<16x64xf32>
    %2 = arith.truncf %1 : vector<16x64xf32> to vector<16x64xbf16>
    %c0_2 = arith.constant 0 : index
    %c0_3 = arith.constant 0 : index
    %3 = vector.load %arg2[%c0_2, %c0_3] : memref<64x192xbf16, #tpu.memory_space<vmem>>, vector<64x192xbf16>
    %c0_4 = arith.constant 0 : index
    %c0_5 = arith.constant 0 : index
    %4 = vector.load %arg3[%c0_4, %c0_5] : memref<64x64xbf16, #tpu.memory_space<vmem>>, vector<64x64xbf16>
    %c0_6 = arith.constant 0 : index
    %c0_7 = arith.constant 0 : index
    %5 = vector.load %arg4[%c0_6, %c0_7] : memref<1x64xf32, #tpu.memory_space<vmem>>, vector<1x64xf32>
    %cst = arith.constant dense<0.000000e+00> : vector<16x192xf32>
    %6 = tpu.matmul %2, %3, %cst {dimension_numbers = #tpu.dot_dimension_numbers<[1], [0], [0], [1], [0, 0, 1, 1], [], []>} : vector<16x64xbf16>, vector<64x192xbf16>, vector<16x192xf32> -> vector<16x192xf32>
    %7 = arith.truncf %6 : vector<16x192xf32> to vector<16x192xbf16>
    %8 = vector.extract_strided_slice %7 {offsets = [0, 0], sizes = [16, 16], strides = [1, 1]} : vector<16x192xbf16> to vector<16x16xbf16>
    %9 = vector.extract_strided_slice %7 {offsets = [0, 64], sizes = [16, 16], strides = [1, 1]} : vector<16x192xbf16> to vector<16x16xbf16>
    %10 = vector.extract_strided_slice %7 {offsets = [0, 128], sizes = [16, 16], strides = [1, 1]} : vector<16x192xbf16> to vector<16x16xbf16>
    %cst_8 = arith.constant dense<0.000000e+00> : vector<16x16xf32>
    %11 = tpu.matmul %8, %9, %cst_8 {dimension_numbers = #tpu.dot_dimension_numbers<[1], [1], [0], [0], [0, 0, 1, 0], [], []>} : vector<16x16xbf16>, vector<16x16xbf16>, vector<16x16xf32> -> vector<16x16xf32>
    %cst_9 = arith.constant dense<0xFF800000> : vector<16xf32>
    %12 = vector.multi_reduction <maximumf>, %11, %cst_9 [1] : vector<16x16xf32> to vector<16xf32>
    %13 = vector.shape_cast %12 : vector<16xf32> to vector<16x1xf32>
    %14 = vector.broadcast %13 : vector<16x1xf32> to vector<16x16xf32>
    %15 = arith.subf %11, %14 : vector<16x16xf32>
    %16 = math.exp %15 : vector<16x16xf32>
    %cst_10 = arith.constant dense<0.000000e+00> : vector<16xf32>
    %17 = vector.multi_reduction <add>, %16, %cst_10 [1] : vector<16x16xf32> to vector<16xf32>
    %18 = vector.shape_cast %17 : vector<16xf32> to vector<16x1xf32>
    %19 = arith.truncf %16 : vector<16x16xf32> to vector<16x16xbf16>
    %cst_11 = arith.constant dense<0.000000e+00> : vector<16x16xf32>
    %20 = tpu.matmul %19, %10, %cst_11 {dimension_numbers = #tpu.dot_dimension_numbers<[1], [0], [0], [1], [0, 0, 1, 1], [], []>} : vector<16x16xbf16>, vector<16x16xbf16>, vector<16x16xf32> -> vector<16x16xf32>
    %21 = tpu.reciprocal %18 {approx = true} : vector<16x1xf32> -> vector<16x1xf32>
    %22 = vector.broadcast %21 : vector<16x1xf32> to vector<16x16xf32>
    %23 = arith.mulf %20, %22 : vector<16x16xf32>
    %24 = arith.truncf %23 : vector<16x16xf32> to vector<16x16xbf16>
    %c0_12 = arith.constant 0 : index
    %c0_13 = arith.constant 0 : index
    %25 = vector.load %arg6[%c0_12, %c0_13] : memref<16x64xbf16, #tpu.memory_space<vmem>>, vector<16x16xbf16>
    tpu.vector_store %arg6[%c0_12, %c0_13], %24 {strides = array<i32>} : memref<16x64xbf16, #tpu.memory_space<vmem>>, vector<16x16xbf16>,
    %26 = vector.extract_strided_slice %7 {offsets = [0, 16], sizes = [16, 16], strides = [1, 1]} : vector<16x192xbf16> to vector<16x16xbf16>
    %27 = vector.extract_strided_slice %7 {offsets = [0, 80], sizes = [16, 16], strides = [1, 1]} : vector<16x192xbf16> to vector<16x16xbf16>
    %28 = vector.extract_strided_slice %7 {offsets = [0, 144], sizes = [16, 16], strides = [1, 1]} : vector<16x192xbf16> to vector<16x16xbf16>
    %cst_14 = arith.constant dense<0.000000e+00> : vector<16x16xf32>
    %29 = tpu.matmul %26, %27, %cst_14 {dimension_numbers = #tpu.dot_dimension_numbers<[1], [1], [0], [0], [0, 0, 1, 0], [], []>} : vector<16x16xbf16>, vector<16x16xbf16>, vector<16x16xf32> -> vector<16x16xf32>
    %cst_15 = arith.constant dense<0xFF800000> : vector<16xf32>
    %30 = vector.multi_reduction <maximumf>, %29, %cst_15 [1] : vector<16x16xf32> to vector<16xf32>
    %31 = vector.shape_cast %30 : vector<16xf32> to vector<16x1xf32>
    %32 = vector.broadcast %31 : vector<16x1xf32> to vector<16x16xf32>
    %33 = arith.subf %29, %32 : vector<16x16xf32>
    %34 = math.exp %33 : vector<16x16xf32>
    %cst_16 = arith.constant dense<0.000000e+00> : vector<16xf32>
    %35 = vector.multi_reduction <add>, %34, %cst_16 [1] : vector<16x16xf32> to vector<16xf32>
    %36 = vector.shape_cast %35 : vector<16xf32> to vector<16x1xf32>
    %37 = arith.truncf %34 : vector<16x16xf32> to vector<16x16xbf16>
    %cst_17 = arith.constant dense<0.000000e+00> : vector<16x16xf32>
    %38 = tpu.matmul %37, %28, %cst_17 {dimension_numbers = #tpu.dot_dimension_numbers<[1], [0], [0], [1], [0, 0, 1, 1], [], []>} : vector<16x16xbf16>, vector<16x16xbf16>, vector<16x16xf32> -> vector<16x16xf32>
    %39 = tpu.reciprocal %36 {approx = true} : vector<16x1xf32> -> vector<16x1xf32>
    %40 = vector.broadcast %39 : vector<16x1xf32> to vector<16x16xf32>
    %41 = arith.mulf %38, %40 : vector<16x16xf32>
    %42 = arith.truncf %41 : vector<16x16xf32> to vector<16x16xbf16>
    %c0_18 = arith.constant 0 : index
    %c16 = arith.constant 16 : index
    %43 = vector.load %arg6[%c0_18, %c16] : memref<16x64xbf16, #tpu.memory_space<vmem>>, vector<16x16xbf16>
    tpu.vector_store %arg6[%c0_18, %c16], %42 {strides = array<i32>} : memref<16x64xbf16, #tpu.memory_space<vmem>>, vector<16x16xbf16>,
    %44 = vector.extract_strided_slice %7 {offsets = [0, 32], sizes = [16, 16], strides = [1, 1]} : vector<16x192xbf16> to vector<16x16xbf16>
    %45 = vector.extract_strided_slice %7 {offsets = [0, 96], sizes = [16, 16], strides = [1, 1]} : vector<16x192xbf16> to vector<16x16xbf16>
    %46 = vector.extract_strided_slice %7 {offsets = [0, 160], sizes = [16, 16], strides = [1, 1]} : vector<16x192xbf16> to vector<16x16xbf16>
    %cst_19 = arith.constant dense<0.000000e+00> : vector<16x16xf32>
    %47 = tpu.matmul %44, %45, %cst_19 {dimension_numbers = #tpu.dot_dimension_numbers<[1], [1], [0], [0], [0, 0, 1, 0], [], []>} : vector<16x16xbf16>, vector<16x16xbf16>, vector<16x16xf32> -> vector<16x16xf32>
    %cst_20 = arith.constant dense<0xFF800000> : vector<16xf32>
    %48 = vector.multi_reduction <maximumf>, %47, %cst_20 [1] : vector<16x16xf32> to vector<16xf32>
    %49 = vector.shape_cast %48 : vector<16xf32> to vector<16x1xf32>
    %50 = vector.broadcast %49 : vector<16x1xf32> to vector<16x16xf32>
    %51 = arith.subf %47, %50 : vector<16x16xf32>
    %52 = math.exp %51 : vector<16x16xf32>
    %cst_21 = arith.constant dense<0.000000e+00> : vector<16xf32>
    %53 = vector.multi_reduction <add>, %52, %cst_21 [1] : vector<16x16xf32> to vector<16xf32>
    %54 = vector.shape_cast %53 : vector<16xf32> to vector<16x1xf32>
    %55 = arith.truncf %52 : vector<16x16xf32> to vector<16x16xbf16>
    %cst_22 = arith.constant dense<0.000000e+00> : vector<16x16xf32>
    %56 = tpu.matmul %55, %46, %cst_22 {dimension_numbers = #tpu.dot_dimension_numbers<[1], [0], [0], [1], [0, 0, 1, 1], [], []>} : vector<16x16xbf16>, vector<16x16xbf16>, vector<16x16xf32> -> vector<16x16xf32>
    %57 = tpu.reciprocal %54 {approx = true} : vector<16x1xf32> -> vector<16x1xf32>
    %58 = vector.broadcast %57 : vector<16x1xf32> to vector<16x16xf32>
    %59 = arith.mulf %56, %58 : vector<16x16xf32>
    %60 = arith.truncf %59 : vector<16x16xf32> to vector<16x16xbf16>
    %c0_23 = arith.constant 0 : index
    %c32 = arith.constant 32 : index
    %61 = vector.load %arg6[%c0_23, %c32] : memref<16x64xbf16, #tpu.memory_space<vmem>>, vector<16x16xbf16>
    tpu.vector_store %arg6[%c0_23, %c32], %60 {strides = array<i32>} : memref<16x64xbf16, #tpu.memory_space<vmem>>, vector<16x16xbf16>,
    %62 = vector.extract_strided_slice %7 {offsets = [0, 48], sizes = [16, 16], strides = [1, 1]} : vector<16x192xbf16> to vector<16x16xbf16>
    %63 = vector.extract_strided_slice %7 {offsets = [0, 112], sizes = [16, 16], strides = [1, 1]} : vector<16x192xbf16> to vector<16x16xbf16>
    %64 = vector.extract_strided_slice %7 {offsets = [0, 176], sizes = [16, 16], strides = [1, 1]} : vector<16x192xbf16> to vector<16x16xbf16>
    %cst_24 = arith.constant dense<0.000000e+00> : vector<16x16xf32>
    %65 = tpu.matmul %62, %63, %cst_24 {dimension_numbers = #tpu.dot_dimension_numbers<[1], [1], [0], [0], [0, 0, 1, 0], [], []>} : vector<16x16xbf16>, vector<16x16xbf16>, vector<16x16xf32> -> vector<16x16xf32>
    %cst_25 = arith.constant dense<0xFF800000> : vector<16xf32>
    %66 = vector.multi_reduction <maximumf>, %65, %cst_25 [1] : vector<16x16xf32> to vector<16xf32>
    %67 = vector.shape_cast %66 : vector<16xf32> to vector<16x1xf32>
    %68 = vector.broadcast %67 : vector<16x1xf32> to vector<16x16xf32>
    %69 = arith.subf %65, %68 : vector<16x16xf32>
    %70 = math.exp %69 : vector<16x16xf32>
    %cst_26 = arith.constant dense<0.000000e+00> : vector<16xf32>
    %71 = vector.multi_reduction <add>, %70, %cst_26 [1] : vector<16x16xf32> to vector<16xf32>
    %72 = vector.shape_cast %71 : vector<16xf32> to vector<16x1xf32>
    %73 = arith.truncf %70 : vector<16x16xf32> to vector<16x16xbf16>
    %cst_27 = arith.constant dense<0.000000e+00> : vector<16x16xf32>
    %74 = tpu.matmul %73, %64, %cst_27 {dimension_numbers = #tpu.dot_dimension_numbers<[1], [0], [0], [1], [0, 0, 1, 1], [], []>} : vector<16x16xbf16>, vector<16x16xbf16>, vector<16x16xf32> -> vector<16x16xf32>
    %75 = tpu.reciprocal %72 {approx = true} : vector<16x1xf32> -> vector<16x1xf32>
    %76 = vector.broadcast %75 : vector<16x1xf32> to vector<16x16xf32>
    %77 = arith.mulf %74, %76 : vector<16x16xf32>
    %78 = arith.truncf %77 : vector<16x16xf32> to vector<16x16xbf16>
    %c0_28 = arith.constant 0 : index
    %c48 = arith.constant 48 : index
    %79 = vector.load %arg6[%c0_28, %c48] : memref<16x64xbf16, #tpu.memory_space<vmem>>, vector<16x16xbf16>
    tpu.vector_store %arg6[%c0_28, %c48], %78 {strides = array<i32>} : memref<16x64xbf16, #tpu.memory_space<vmem>>, vector<16x16xbf16>,
    %c0_29 = arith.constant 0 : index
    %c0_30 = arith.constant 0 : index
    %80 = vector.load %arg6[%c0_29, %c0_30] : memref<16x64xbf16, #tpu.memory_space<vmem>>, vector<16x64xbf16>
    %cst_31 = arith.constant dense<0.000000e+00> : vector<16x64xf32>
    %81 = tpu.matmul %80, %4, %cst_31 {dimension_numbers = #tpu.dot_dimension_numbers<[1], [0], [0], [1], [0, 0, 1, 1], [], []>} : vector<16x64xbf16>, vector<64x64xbf16>, vector<16x64xf32> -> vector<16x64xf32>
    %82 = vector.broadcast %5 : vector<1x64xf32> to vector<16x64xf32>
    %83 = arith.addf %81, %82 : vector<16x64xf32>
    %c0_32 = arith.constant 0 : index
    %c0_33 = arith.constant 0 : index
    %c0_34 = arith.constant 0 : index
    %84 = vector.load %arg5[%c0_32, %c0_33, %c0_34] : memref<1x16x64xf32, #tpu.memory_space<vmem>>, vector<1x16x64xf32>
    %85 = vector.shape_cast %84 : vector<1x16x64xf32> to vector<16x64xf32>
    %86 = vector.shape_cast %83 : vector<16x64xf32> to vector<1x16x64xf32>
    tpu.vector_store %arg5[%c0_32, %c0_33, %c0_34], %86 {strides = array<i32>} : memref<1x16x64xf32, #tpu.memory_space<vmem>>, vector<1x16x64xf32>,
    return
  }
  func.func @transform_0(%arg0: i32) -> (i32, i32, i32) {
    %c0_i32 = arith.constant 0 : i32
    %c0_i32_0 = arith.constant 0 : i32
    %c0_i32_1 = arith.constant 0 : i32
    return %arg0, %c0_i32, %c0_i32_0 : i32, i32, i32
  }
  func.func @transform_1(%arg0: i32) -> (i32, i32) {
    %c0_i32 = arith.constant 0 : i32
    %c0_i32_0 = arith.constant 0 : i32
    %c0_i32_1 = arith.constant 0 : i32
    return %c0_i32, %c0_i32_0 : i32, i32
  }
  func.func @transform_2(%arg0: i32) -> (i32, i32) {
    %c0_i32 = arith.constant 0 : i32
    %c0_i32_0 = arith.constant 0 : i32
    %c0_i32_1 = arith.constant 0 : i32
    return %c0_i32, %c0_i32_0 : i32, i32
  }
  func.func @transform_3(%arg0: i32) -> (i32, i32) {
    %c0_i32 = arith.constant 0 : i32
    %c0_i32_0 = arith.constant 0 : i32
    %c0_i32_1 = arith.constant 0 : i32
    return %c0_i32, %c0_i32_0 : i32, i32
  }
  func.func @transform_4(%arg0: i32) -> (i32, i32, i32) {
    %c0_i32 = arith.constant 0 : i32
    %c0_i32_0 = arith.constant 0 : i32
    %c0_i32_1 = arith.constant 0 : i32
    return %arg0, %c0_i32, %c0_i32_0 : i32, i32, i32
  }
}

</mosaic_0001>

<llo_original>
// kernel: attention_forward.1
$region0: #{attention_forward.1}
  #allocation0 [shape = 'u32[]', space=smem, size = 0x4, offset = 0x4, fixed_abs, tag = 'smem constant byte address 0x4 - core index']
  #allocation1 [shape = 'u32[144,128]{1,0:T(1,128)}', space=vmem, size = 0x12000, scoped, tag = 'internal scratch']
  #allocation2 [shape = 'bf16[16,64]{1,0:T(16,128)(2,1)}', space=vmem, size = 0x1000, scoped, tag = 'scratch operand']
  %s0 = inlined_call_operand.vmem [shape: f32[2,16,64], index: 0, kind: input, shape index: {}]
  %s1 = inlined_call_operand.vmem [shape: bf16[64,192], index: 1, kind: input, shape index: {}]
  %s2 = inlined_call_operand.vmem [shape: bf16[64,64], index: 2, kind: input, shape index: {}]
  %s3 = inlined_call_operand.vmem [shape: f32[1,64], index: 3, kind: input, shape index: {}]
  %s4 = inlined_call_operand.hbm [shape: f32[2,16,64], index: 4, kind: output, shape index: {}]
  %s5 = sld [smem:[#allocation0]]
  $region49: #{attention_forward.1} parent=0
    _
  %s7 = ssub.s32 1, %s5
  %s8 = scalar_select 0, %s7, %s5
  $region1: #{attention_forward.1} parent=0
    #allocation3 [shape = 'u8[16384]{0}', space=vmem, size = 0x4000, scoped, tag = 'output window, operand 0']
    #allocation4 [shape = 's32[2]{0}', space=sflag, size = 0x8, scoped, tag = 'scoped memory for attention_forward.1']
    %9 = vsyncpa [#allocation4], 0
    %s10 = scalar_lea.sflag [#allocation4], 1
    %11 = vsyncpa %s10, 0
    loop: start=0, step=1, limit=4
    $region2: #{attention_forward.1} parent=1 // loop_pre_header
      _
    $region3: #{attention_forward.1} parent=1 // loop_header
      %s13 = sphi 0, %s17
      %p14 = scmp.ge.s32.totalorder %s13, 4
      %s23 = sphi 0, %s25
      %s26 = sphi 0, %s23
      %s27 = sphi 0, %s26
      %s43 = sphi 0, %s27
      %s47 = sphi 0, %s47
      %s49 = sphi 0, %s47
      %s50 = sphi 0, %s49
      %s64 = sphi 0, %s50
      %s68 = sphi 0, %s68
      %s70 = sphi 0, %s68
      %s71 = sphi 0, %s70
      %s85 = sphi 0, %s71
      %s89 = sphi 0, %s89
      %s91 = sphi 0, %s89
      %s92 = sphi 0, %s91
      %s106 = sphi 0, %s92
      %s112 = sphi 0, %s114
      %s115 = sphi 0, %s112
      %s116 = sphi 0, %s115
      %s132 = sphi 0, %s116
    $region4: #{attention_forward.1} parent=1 // loop_header_branch
      %16 = sbr.rel (%p14) target = $region8
    $region5: #{attention_forward.1} parent=1 // loop_body
      %s18 = ssub.s32 %s13, 1
      %s19 = ssub.s32 %s13, 2
      %s20 = sadd.s32 %s13, 1
      %s21 = ssub.s32 %s13, %s20
      %p22 = scmp.eq.s32.totalorder %s21, 0
      %s24 = sadd.s32 %s23, 1
      %s25 = scalar_select %p22, %s23, %s24
      %p28 = pneg %p22
      %p29 = scmp.eq.s32.totalorder %s13, 1
      %p30 = por %p28, %p29
      %p31 = scmp.ne.s32.totalorder %s23, %s26
      %p32 = scmp.eq.s32.totalorder %s13, 0
      %p33 = por %p31, %p32
      %p34 = scmp.ne.s32.totalorder %s23, %s26
      %p35 = scmp.eq.s32.totalorder %s18, 1
      %p36 = por %p34, %p35
      %p37 = scmp.ne.s32.totalorder %s26, %s27
      %p38 = scmp.eq.s32.totalorder %s18, 0
      %p39 = por %p37, %p38
      %p40 = scmp.ne.s32.totalorder %s26, %s27
      %p41 = scmp.eq.s32.totalorder %s19, 1
      %p42 = por %p40, %p41
      %p44 = scmp.ne.s32.totalorder %s27, %s43
      %p45 = scmp.eq.s32.totalorder %s19, 0
      %p46 = por %p44, %p45
      %s48 = sadd.s32 %s47, 1
      %p51 = scmp.eq.s32.totalorder %s13, 1
      %p52 = scmp.ne.s32.totalorder %s47, %s49
      %p53 = scmp.eq.s32.totalorder %s13, 0
      %p54 = por %p52, %p53
      %p55 = scmp.ne.s32.totalorder %s47, %s49
      %p56 = scmp.eq.s32.totalorder %s18, 1
      %p57 = por %p55, %p56
      %p58 = scmp.ne.s32.totalorder %s49, %s50
      %p59 = scmp.eq.s32.totalorder %s18, 0
      %p60 = por %p58, %p59
      %p61 = scmp.ne.s32.totalorder %s49, %s50
      %p62 = scmp.eq.s32.totalorder %s19, 1
      %p63 = por %p61, %p62
      %p65 = scmp.ne.s32.totalorder %s50, %s64
      %p66 = scmp.eq.s32.totalorder %s19, 0
      %p67 = por %p65, %p66
      %s69 = sadd.s32 %s68, 1
      %p72 = scmp.eq.s32.totalorder %s13, 1
      %p73 = scmp.ne.s32.totalorder %s68, %s70
      %p74 = scmp.eq.s32.totalorder %s13, 0
      %p75 = por %p73, %p74
      %p76 = scmp.ne.s32.totalorder %s68, %s70
      %p77 = scmp.eq.s32.totalorder %s18, 1
      %p78 = por %p76, %p77
      %p79 = scmp.ne.s32.totalorder %s70, %s71
      %p80 = scmp.eq.s32.totalorder %s18, 0
      %p81 = por %p79, %p80
      %p82 = scmp.ne.s32.totalorder %s70, %s71
      %p83 = scmp.eq.s32.totalorder %s19, 1
      %p84 = por %p82, %p83
      %p86 = scmp.ne.s32.totalorder %s71, %s85
      %p87 = scmp.eq.s32.totalorder %s19, 0
      %p88 = por %p86, %p87
      %s90 = sadd.s32 %s89, 1
      %p93 = scmp.eq.s32.totalorder %s13, 1
      %p94 = scmp.ne.s32.totalorder %s89, %s91
      %p95 = scmp.eq.s32.totalorder %s13, 0
      %p96 = por %p94, %p95
      %p97 = scmp.ne.s32.totalorder %s89, %s91
      %p98 = scmp.eq.s32.totalorder %s18, 1
      %p99 = por %p97, %p98
      %p100 = scmp.ne.s32.totalorder %s91, %s92
      %p101 = scmp.eq.s32.totalorder %s18, 0
      %p102 = por %p100, %p101
      %p103 = scmp.ne.s32.totalorder %s91, %s92
      %p104 = scmp.eq.s32.totalorder %s19, 1
      %p105 = por %p103, %p104
      %p107 = scmp.ne.s32.totalorder %s92, %s106
      %p108 = scmp.eq.s32.totalorder %s19, 0
      %p109 = por %p107, %p108
      %s110 = ssub.s32 %s13, %s20
      %p111 = scmp.eq.s32.totalorder %s110, 0
      %s113 = sadd.s32 %s112, 1
      %s114 = scalar_select %p111, %s112, %s113
      %p117 = pneg %p111
      %p118 = scmp.eq.s32.totalorder %s13, 1
      %p119 = por %p117, %p118
      %p120 = scmp.ne.s32.totalorder %s112, %s115
      %p121 = scmp.eq.s32.totalorder %s13, 0
      %p122 = por %p120, %p121
      %p123 = scmp.ne.s32.totalorder %s112, %s115
      %p124 = scmp.eq.s32.totalorder %s18, 1
      %p125 = por %p123, %p124
      %p126 = scmp.ne.s32.totalorder %s115, %s116
      %p127 = scmp.eq.s32.totalorder %s18, 0
      %p128 = por %p126, %p127
      %p129 = scmp.ne.s32.totalorder %s115, %s116
      %p130 = scmp.eq.s32.totalorder %s19, 1
      %p131 = por %p129, %p130
      %p133 = scmp.ne.s32.totalorder %s116, %s132
      %p134 = scmp.eq.s32.totalorder %s19, 0
      %p135 = por %p133, %p134
      %p136 = scmp.le.s32.totalorder 1, %s13
      %p137 = scmp.lt.s32.totalorder %s13, 3
      %p138 = pnand %p136, %p137
      %p139 = pneg %p138
      // Predicated region
      $region9: #{attention_forward.1} parent=5 // pred_check
        _
      $region10: #{attention_forward.1} parent=5 // pred_check_branch
        %141 = sbr.rel (%p138) target = $region12
      $region11: #{attention_forward.1} parent=5 // pred_region
        %s142 = ssub.s32 %s13, 1
        // Predicated region
        $region13: #{attention_forward.1} parent=11 // pred_check
          %p143 = pneg %p60
        $region14: #{attention_forward.1} parent=11 // pred_check_branch
          %145 = sbr.rel (%p143) target = $region16
        $region15: #{attention_forward.1} parent=11 // pred_region
          _
        $region16: #{attention_forward.1} parent=11 // pred_fallthru
          _
        // Predicated region
        $region17: #{attention_forward.1} parent=11 // pred_check
          %p146 = pneg %p81
        $region18: #{attention_forward.1} parent=11 // pred_check_branch
          %148 = sbr.rel (%p146) target = $region20
        $region19: #{attention_forward.1} parent=11 // pred_region
          _
        $region20: #{attention_forward.1} parent=11 // pred_fallthru
          _
        // Predicated region
        $region21: #{attention_forward.1} parent=11 // pred_check
          %p149 = pneg %p102
        $region22: #{attention_forward.1} parent=11 // pred_check_branch
          %151 = sbr.rel (%p149) target = $region24
        $region23: #{attention_forward.1} parent=11 // pred_region
          _
        $region24: #{attention_forward.1} parent=11 // pred_fallthru
          _
      $region12: #{attention_forward.1} parent=5 // pred_fallthru
        _
      %p152 = scmp.lt.s32.totalorder %s13, 2
      // Predicated region
      $region25: #{attention_forward.1} parent=5 // pred_check
        %p153 = pneg %p152
      $region26: #{attention_forward.1} parent=5 // pred_check_branch
        %155 = sbr.rel (%p153) target = $region28
      $region27: #{attention_forward.1} parent=5 // pred_region
        // Predicated region
        $region29: #{attention_forward.1} parent=27 // pred_check
          %p156 = pneg %p33
        $region30: #{attention_forward.1} parent=27 // pred_check_branch
          %158 = sbr.rel (%p156) target = $region32
        $region31: #{attention_forward.1} parent=27 // pred_region
          %p159 = scmp.lt.s32.totalorder %s13, 1
          %s160 = scalar_select %p159, %s13, 1
          %s161 = smul.addr %s160, 2
          %s162 = smul.addr %s161, 8
          %s163 = scalar_lea.vmem %s0, %s162
        $region32: #{attention_forward.1} parent=27 // pred_fallthru
          _
      $region28: #{attention_forward.1} parent=5 // pred_fallthru
        _
      %p164 = scmp.le.s32.totalorder 1, %s13
      %p165 = scmp.lt.s32.totalorder %s13, 3
      %p166 = pnand %p164, %p165
      %p167 = pneg %p166
      // Predicated region
      $region33: #{attention_forward.1} parent=5 // pred_check
        _
      $region34: #{attention_forward.1} parent=5 // pred_check_branch
        %169 = sbr.rel (%p166) target = $region36
      $region35: #{attention_forward.1} parent=5 // pred_region
        %s170 = ssub.s32 %s13, 1
        %p171 = scmp.lt.s32.totalorder %s18, 1
        %s172 = scalar_select %p171, %s18, 1
        %s173 = smul.addr %s172, 2
        %s174 = smul.addr %s173, 8
        %s175 = scalar_lea.vmem %s0, %s174
        %p176 = pneg %p39
        %p177 = pneg %p36
        %p178 = pneg %p60
        %p179 = pneg %p57
        %p180 = pneg %p81
        %p181 = pneg %p78
        %p182 = pneg %p102
        %p183 = pneg %p99
        %p184 = pneg %p128
        %p185 = pneg %p125
        %s186 = sand.u32 %s115, 1
        %s187 = scalar_lea.sflag [#allocation4], %s186
        %s188 = sand.u32 %s115, 1
        %s189 = smul.addr %s188, 16
        %s190 = scalar_lea.vmem [#allocation3], %s189
        %p191 = scmp.lt.s32.totalorder %s18, 1
        %s192 = scalar_select %p191, %s18, 1
        %s193 = smul.addr %s192, 2
        %s194 = smul.addr %s193, 8
        %s195 = scalar_lea.vmem %s0, %s194
        %v197 = vld [vmem:[%s195] sm:$0xff]
        %v198 = vld [vmem:[%s195 + $0x8] sm:$0xff]
        %v199 = vpack.c.bf16 %v198, %v197
        %v200 = vld [vmem:[%s1] sm:$0xff]
        %v201 = vld [vmem:[%s1 + $0x8] sm:$0xff]
        %v202 = vld [vmem:[%s1 + $0x10] sm:$0xff]
        %v203 = vld [vmem:[%s1 + $0x18] sm:$0xff]
        %v204 = vld [vmem:[%s1 + $0x20] sm:$0xff]
        %v205 = vld [vmem:[%s1 + $0x28] sm:$0xff]
        %v206 = vld [vmem:[%s1 + $0x30] sm:$0xff]
        %v207 = vld [vmem:[%s1 + $0x38] sm:$0xff]
        %v208 = vld [vmem:[%s2] sm:$0xf]
        %v209 = vld [vmem:[%s2 + $0x4] sm:$0xf]
        %v210 = vld [vmem:[%s2 + $0x8] sm:$0xf]
        %v211 = vld [vmem:[%s2 + $0xc] sm:$0xf]
        %v212 = vld [vmem:[%s2 + $0x10] sm:$0xf]
        %v213 = vld [vmem:[%s2 + $0x14] sm:$0xf]
        %v214 = vld [vmem:[%s2 + $0x18] sm:$0xf]
        %v215 = vld [vmem:[%s2 + $0x1c] sm:$0xf]
        %v216 = vld [vmem:[%s3] sm:$0x1]
        %v225 = vunpack.c.l.b16 %v200
        %v226 = vunpack.c.h.b16 %v200
        %v227 = vunpack.c.l.b16 %v201
        %v228 = vunpack.c.h.b16 %v201
        %v229 = vunpack.c.l.b16 %v202
        %v230 = vunpack.c.h.b16 %v202
        %v231 = vunpack.c.l.b16 %v203
        %v232 = vunpack.c.h.b16 %v203
        %v233 = vunpack.c.l.b16 %v204
        %v234 = vunpack.c.h.b16 %v204
        %v235 = vunpack.c.l.b16 %v205
        %v236 = vunpack.c.h.b16 %v205
        %v237 = vunpack.c.l.b16 %v206
        %v238 = vunpack.c.h.b16 %v206
        %v239 = vunpack.c.l.b16 %v207
        %v240 = vunpack.c.h.b16 %v207
        %v241 = vpack.c.b16 %v227, %v225
        %v242 = vpack.c.b16 %v228, %v226
        %v243 = vpack.c.b16 %v231, %v229
        %v244 = vpack.c.b16 %v232, %v230
        %v245 = vpack.c.b16 %v235, %v233
        %v246 = vpack.c.b16 %v236, %v234
        %v247 = vpack.c.b16 %v239, %v237
        %v248 = vpack.c.b16 %v240, %v238
        %vm257 = vcmask 523264
        %v259 = vsel %vm257, %v199, 0
        %261 = vmatprep.subr.bf16.mxu0 %v242
        %262 = vmatpush1.bf16.msra.mxu0 %v241
        %263 = vmatprep.subr.bf16.mxu0 %v244
        %264 = vmatpush1.bf16.msra.mxu0 %v243
        %265 = vmatprep.subr.bf16.mxu0 %v246
        %266 = vmatpush1.bf16.msra.mxu0 %v245
        %267 = vmatprep.subr.bf16.mxu0 %v248
        %268 = vmatpush1.bf16.msra.mxu0 %v247
        %269 = vmatprep.subr.bf16.mxu0 0
        %270 = vmatpush1.bf16.msra.mxu0 0
        %271 = vmatprep.subr.bf16.mxu0 0
        %272 = vmatpush1.bf16.msra.mxu0 0
        %273 = vmatprep.subr.bf16.mxu0 0
        %274 = vmatpush1.bf16.msra.mxu0 0
        %275 = vmatprep.subr.bf16.mxu0 0
        %276 = vmatpush1.bf16.msra.mxu0 0
        %277 = vmatprep.subr.bf16.mxu0 0
        %278 = vmatpush1.bf16.msra.mxu0 0
        %279 = vmatprep.subr.bf16.mxu0 0
        %280 = vmatpush1.bf16.msra.mxu0 0
        %281 = vmatprep.subr.bf16.mxu0 0
        %282 = vmatpush1.bf16.msra.mxu0 0
        %283 = vmatprep.subr.bf16.mxu0 0
        %284 = vmatpush1.bf16.msra.mxu0 0
        %285 = vmatprep.subr.bf16.mxu0 0
        %286 = vmatpush1.bf16.msra.mxu0 0
        %287 = vmatprep.subr.bf16.mxu0 0
        %288 = vmatpush1.bf16.msra.mxu0 0
        %289 = vmatprep.subr.bf16.mxu0 0
        %290 = vmatpush1.bf16.msra.mxu0 0
        %291 = vmatprep.subr.bf16.mxu0 0
        %292 = vmatpush1.bf16.msra.mxu0 0
        %293 = vmatprep.mubr.bf16.mxu0 0
        %294 = vmatmul.mubr.bf16.gmra.mrb[0].mxu0 %v259
        %v295 = vpop.f32.mrb[0].mxu0
        %v296 = vadd.f32 0.0, %v295
        %v297 = vpop.f32.mrb[0].mxu0
        %v298 = vadd.f32 0.0, %v297
        %v299 = vpop.f32.mrb[0].mxu0
        %v300 = vadd.f32 0.0, %v299
        %v301 = vpop.f32.mrb[0].mxu0
        %v302 = vadd.f32 0.0, %v301
        %303 = vdwg.mxu0
        %v304 = vpack.c.bf16 %v300, %v296
        %v305 = vpack.c.bf16 %v302, %v298
        %307 = vrot.lane.b32.xlu0 %v304, 64
        %v308 = vpop.permute.xlu0 %307
        %vm309 = vcmask 130048
        %v311 = vsel %vm309, %v304, 0
        %v314 = vsel %vm309, %v308, 0
        %316 = vmatprep.subr.bf16.mxu0 0
        %317 = vmatpush1.bf16.xpose.msra.mxu0 %v314
        %318 = vmatprep.subr.bf16.mxu0 0
        %319 = vmatpush1.bf16.xpose.msra.mxu0 0
        %320 = vmatprep.subr.bf16.mxu0 0
        %321 = vmatpush1.bf16.xpose.msra.mxu0 0
        %322 = vmatprep.subr.bf16.mxu0 0
        %323 = vmatpush1.bf16.xpose.msra.mxu0 0
        %324 = vmatprep.subr.bf16.mxu0 0
        %325 = vmatpush1.bf16.xpose.msra.mxu0 0
        %326 = vmatprep.subr.bf16.mxu0 0
        %327 = vmatpush1.bf16.xpose.msra.mxu0 0
        %328 = vmatprep.subr.bf16.mxu0 0
        %329 = vmatpush1.bf16.xpose.msra.mxu0 0
        %330 = vmatprep.subr.bf16.mxu0 0
        %331 = vmatpush1.bf16.xpose.msra.mxu0 0
        %332 = vmatprep.subr.bf16.mxu0 0
        %333 = vmatpush1.bf16.xpose.msra.mxu0 0
        %334 = vmatprep.subr.bf16.mxu0 0
        %335 = vmatpush1.bf16.xpose.msra.mxu0 0
        %336 = vmatprep.subr.bf16.mxu0 0
        %337 = vmatpush1.bf16.xpose.msra.mxu0 0
        %338 = vmatprep.subr.bf16.mxu0 0
        %339 = vmatpush1.bf16.xpose.msra.mxu0 0
        %340 = vmatprep.subr.bf16.mxu0 0
        %341 = vmatpush1.bf16.xpose.msra.mxu0 0
        %342 = vmatprep.subr.bf16.mxu0 0
        %343 = vmatpush1.bf16.xpose.msra.mxu0 0
        %344 = vmatprep.subr.bf16.mxu0 0
        %345 = vmatpush1.bf16.xpose.msra.mxu0 0
        %346 = vmatprep.subr.bf16.mxu0 0
        %347 = vmatpush1.bf16.xpose.msra.mxu0 0
        %348 = vmatprep.mubr.bf16.mxu0 0
        %349 = vmatmul.mubr.bf16.gmra.mrb[0].mxu0 %v311
        %v350 = vpop.f32.mrb[0].mxu0
        %v351 = vadd.f32 0.0, %v350
        %v352 = vpop.f32.mrb[0].mxu0
        %v353 = vpop.f32.mrb[0].mxu0
        %v354 = vadd.f32 0.0, %v353
        %v355 = vpop.f32.mrb[0].mxu0
        %356 = vdwg.mxu0
        %v357 = vsel %vm309, %v351, -inf
        %358 = vmax.xlane.f32.xlu0 %v357
        %v359 = vpop.xlane.xlu0 %358
        %v360 = vsel %vm309, %v354, -inf
        %361 = vmax.xlane.f32.xlu0 %v360
        %v362 = vpop.xlane.xlu0 %361
        %v363 = vsub.f32 %v351, %v359
        %v364 = vsub.f32 %v354, %v362
        %v365 = vmul.f32 %v363, 1.442695
        %v366 = vpow.pop %v365
        %v367 = vmul.f32 %v364, 1.442695
        %v368 = vpow.pop %v367
        %v369 = vsel %vm309, %v366, 0.0
        %370 = vadd.xlane.f32.xlu0 %v369
        %v371 = vpop.xlane.xlu0 %370
        %v372 = vsel %vm309, %v368, 0.0
        %373 = vadd.xlane.f32.xlu0 %v372
        %v374 = vpop.xlane.xlu0 %373
        %v375 = vpack.c.bf16 %v368, %v366
        %v377 = vsel %vm309, %v375, 0
        %379 = vmatprep.subr.bf16.mxu0 0
        %380 = vmatpush1.bf16.msra.mxu0 %v305
        %381 = vmatprep.subr.bf16.mxu0 0
        %382 = vmatpush1.bf16.msra.mxu0 0
        %383 = vmatprep.subr.bf16.mxu0 0
        %384 = vmatpush1.bf16.msra.mxu0 0
        %385 = vmatprep.subr.bf16.mxu0 0
        %386 = vmatpush1.bf16.msra.mxu0 0
        %387 = vmatprep.subr.bf16.mxu0 0
        %388 = vmatpush1.bf16.msra.mxu0 0
        %389 = vmatprep.subr.bf16.mxu0 0
        %390 = vmatpush1.bf16.msra.mxu0 0
        %391 = vmatprep.subr.bf16.mxu0 0
        %392 = vmatpush1.bf16.msra.mxu0 0
        %393 = vmatprep.subr.bf16.mxu0 0
        %394 = vmatpush1.bf16.msra.mxu0 0
        %395 = vmatprep.subr.bf16.mxu0 0
        %396 = vmatpush1.bf16.msra.mxu0 0
        %397 = vmatprep.subr.bf16.mxu0 0
        %398 = vmatpush1.bf16.msra.mxu0 0
        %399 = vmatprep.subr.bf16.mxu0 0
        %400 = vmatpush1.bf16.msra.mxu0 0
        %401 = vmatprep.subr.bf16.mxu0 0
        %402 = vmatpush1.bf16.msra.mxu0 0
        %403 = vmatprep.subr.bf16.mxu0 0
        %404 = vmatpush1.bf16.msra.mxu0 0
        %405 = vmatprep.subr.bf16.mxu0 0
        %406 = vmatpush1.bf16.msra.mxu0 0
        %407 = vmatprep.subr.bf16.mxu0 0
        %408 = vmatpush1.bf16.msra.mxu0 0
        %409 = vmatprep.subr.bf16.mxu0 0
        %410 = vmatpush1.bf16.msra.mxu0 0
        %411 = vmatprep.mubr.bf16.mxu0 0
        %412 = vmatmul.mubr.bf16.gmra.mrb[0].mxu0 %v377
        %v413 = vpop.f32.mrb[0].mxu0
        %v414 = vadd.f32 0.0, %v413
        %v415 = vpop.f32.mrb[0].mxu0
        %v416 = vpop.f32.mrb[0].mxu0
        %v417 = vadd.f32 0.0, %v416
        %v418 = vpop.f32.mrb[0].mxu0
        %419 = vdwg.mxu0
        %v420 = vrcp.pop %v371
        %v421 = vrcp.pop %v374
        %v422 = vmul.f32 %v414, %v420
        %v423 = vmul.f32 %v417, %v421
        %v424 = vpack.c.bf16 %v423, %v422
        %425 = vst.msk [vmem:[#allocation2] sm:$0xff] %vm309, %v424
        %426 = vrot.lane.b32.xlu0 %v304, 112
        %v427 = vpop.permute.xlu0 %426
        %428 = vrot.lane.b32.xlu0 %v304, 48
        %v429 = vpop.permute.xlu0 %428
        %v431 = vsel %vm309, %v427, 0
        %v434 = vsel %vm309, %v429, 0
        %436 = vmatprep.subr.bf16.mxu0 0
        %437 = vmatpush1.bf16.xpose.msra.mxu0 %v434
        %438 = vmatprep.subr.bf16.mxu0 0
        %439 = vmatpush1.bf16.xpose.msra.mxu0 0
        %440 = vmatprep.subr.bf16.mxu0 0
        %441 = vmatpush1.bf16.xpose.msra.mxu0 0
        %442 = vmatprep.subr.bf16.mxu0 0
        %443 = vmatpush1.bf16.xpose.msra.mxu0 0
        %444 = vmatprep.subr.bf16.mxu0 0
        %445 = vmatpush1.bf16.xpose.msra.mxu0 0
        %446 = vmatprep.subr.bf16.mxu0 0
        %447 = vmatpush1.bf16.xpose.msra.mxu0 0
        %448 = vmatprep.subr.bf16.mxu0 0
        %449 = vmatpush1.bf16.xpose.msra.mxu0 0
        %450 = vmatprep.subr.bf16.mxu0 0
        %451 = vmatpush1.bf16.xpose.msra.mxu0 0
        %452 = vmatprep.subr.bf16.mxu0 0
        %453 = vmatpush1.bf16.xpose.msra.mxu0 0
        %454 = vmatprep.subr.bf16.mxu0 0
        %455 = vmatpush1.bf16.xpose.msra.mxu0 0
        %456 = vmatprep.subr.bf16.mxu0 0
        %457 = vmatpush1.bf16.xpose.msra.mxu0 0
        %458 = vmatprep.subr.bf16.mxu0 0
        %459 = vmatpush1.bf16.xpose.msra.mxu0 0
        %460 = vmatprep.subr.bf16.mxu0 0
        %461 = vmatpush1.bf16.xpose.msra.mxu0 0
        %462 = vmatprep.subr.bf16.mxu0 0
        %463 = vmatpush1.bf16.xpose.msra.mxu0 0
        %464 = vmatprep.subr.bf16.mxu0 0
        %465 = vmatpush1.bf16.xpose.msra.mxu0 0
        %466 = vmatprep.subr.bf16.mxu0 0
        %467 = vmatpush1.bf16.xpose.msra.mxu0 0
        %468 = vmatprep.mubr.bf16.mxu0 0
        %469 = vmatmul.mubr.bf16.gmra.mrb[0].mxu0 %v431
        %v470 = vpop.f32.mrb[0].mxu0
        %v471 = vadd.f32 0.0, %v470
        %v472 = vpop.f32.mrb[0].mxu0
        %v473 = vpop.f32.mrb[0].mxu0
        %v474 = vadd.f32 0.0, %v473
        %v475 = vpop.f32.mrb[0].mxu0
        %476 = vdwg.mxu0
        %v477 = vsel %vm309, %v471, -inf
        %478 = vmax.xlane.f32.xlu0 %v477
        %v479 = vpop.xlane.xlu0 %478
        %v480 = vsel %vm309, %v474, -inf
        %481 = vmax.xlane.f32.xlu0 %v480
        %v482 = vpop.xlane.xlu0 %481
        %v483 = vsub.f32 %v471, %v479
        %v484 = vsub.f32 %v474, %v482
        %v485 = vmul.f32 %v483, 1.442695
        %v486 = vpow.pop %v485
        %v487 = vmul.f32 %v484, 1.442695
        %v488 = vpow.pop %v487
        %v489 = vsel %vm309, %v486, 0.0
        %490 = vadd.xlane.f32.xlu0 %v489
        %v491 = vpop.xlane.xlu0 %490
        %v492 = vsel %vm309, %v488, 0.0
        %493 = vadd.xlane.f32.xlu0 %v492
        %v494 = vpop.xlane.xlu0 %493
        %v495 = vpack.c.bf16 %v488, %v486
        %497 = vrot.lane.b32.xlu0 %v305, 112
        %v498 = vpop.permute.xlu0 %497
        %v501 = vsel %vm309, %v495, 0
        %503 = vmatprep.subr.bf16.mxu0 0
        %504 = vmatpush1.bf16.msra.mxu0 %v498
        %505 = vmatprep.subr.bf16.mxu0 0
        %506 = vmatpush1.bf16.msra.mxu0 0
        %507 = vmatprep.subr.bf16.mxu0 0
        %508 = vmatpush1.bf16.msra.mxu0 0
        %509 = vmatprep.subr.bf16.mxu0 0
        %510 = vmatpush1.bf16.msra.mxu0 0
        %511 = vmatprep.subr.bf16.mxu0 0
        %512 = vmatpush1.bf16.msra.mxu0 0
        %513 = vmatprep.subr.bf16.mxu0 0
        %514 = vmatpush1.bf16.msra.mxu0 0
        %515 = vmatprep.subr.bf16.mxu0 0
        %516 = vmatpush1.bf16.msra.mxu0 0
        %517 = vmatprep.subr.bf16.mxu0 0
        %518 = vmatpush1.bf16.msra.mxu0 0
        %519 = vmatprep.subr.bf16.mxu0 0
        %520 = vmatpush1.bf16.msra.mxu0 0
        %521 = vmatprep.subr.bf16.mxu0 0
        %522 = vmatpush1.bf16.msra.mxu0 0
        %523 = vmatprep.subr.bf16.mxu0 0
        %524 = vmatpush1.bf16.msra.mxu0 0
        %525 = vmatprep.subr.bf16.mxu0 0
        %526 = vmatpush1.bf16.msra.mxu0 0
        %527 = vmatprep.subr.bf16.mxu0 0
        %528 = vmatpush1.bf16.msra.mxu0 0
        %529 = vmatprep.subr.bf16.mxu0 0
        %530 = vmatpush1.bf16.msra.mxu0 0
        %531 = vmatprep.subr.bf16.mxu0 0
        %532 = vmatpush1.bf16.msra.mxu0 0
        %533 = vmatprep.subr.bf16.mxu0 0
        %534 = vmatpush1.bf16.msra.mxu0 0
        %535 = vmatprep.mubr.bf16.mxu0 0
        %536 = vmatmul.mubr.bf16.gmra.mrb[0].mxu0 %v501
        %v537 = vpop.f32.mrb[0].mxu0
        %v538 = vadd.f32 0.0, %v537
        %v539 = vpop.f32.mrb[0].mxu0
        %v540 = vpop.f32.mrb[0].mxu0
        %v541 = vadd.f32 0.0, %v540
        %v542 = vpop.f32.mrb[0].mxu0
        %543 = vdwg.mxu0
        %v544 = vrcp.pop %v491
        %v545 = vrcp.pop %v494
        %v546 = vmul.f32 %v538, %v544
        %v547 = vmul.f32 %v541, %v545
        %v548 = vpack.c.bf16 %v547, %v546
        %550 = vrot.lane.b32.xlu0 %v548, 16
        %v551 = vpop.permute.xlu0 %550
        %vm553 = vcmask 261248
        %554 = vst.msk [vmem:[#allocation2] sm:$0xff] %vm553, %v551
        %555 = vrot.lane.b32.xlu0 %v304, 96
        %v556 = vpop.permute.xlu0 %555
        %557 = vrot.lane.b32.xlu0 %v304, 32
        %v558 = vpop.permute.xlu0 %557
        %v560 = vsel %vm309, %v556, 0
        %v563 = vsel %vm309, %v558, 0
        %565 = vmatprep.subr.bf16.mxu0 0
        %566 = vmatpush1.bf16.xpose.msra.mxu0 %v563
        %567 = vmatprep.subr.bf16.mxu0 0
        %568 = vmatpush1.bf16.xpose.msra.mxu0 0
        %569 = vmatprep.subr.bf16.mxu0 0
        %570 = vmatpush1.bf16.xpose.msra.mxu0 0
        %571 = vmatprep.subr.bf16.mxu0 0
        %572 = vmatpush1.bf16.xpose.msra.mxu0 0
        %573 = vmatprep.subr.bf16.mxu0 0
        %574 = vmatpush1.bf16.xpose.msra.mxu0 0
        %575 = vmatprep.subr.bf16.mxu0 0
        %576 = vmatpush1.bf16.xpose.msra.mxu0 0
        %577 = vmatprep.subr.bf16.mxu0 0
        %578 = vmatpush1.bf16.xpose.msra.mxu0 0
        %579 = vmatprep.subr.bf16.mxu0 0
        %580 = vmatpush1.bf16.xpose.msra.mxu0 0
        %581 = vmatprep.subr.bf16.mxu0 0
        %582 = vmatpush1.bf16.xpose.msra.mxu0 0
        %583 = vmatprep.subr.bf16.mxu0 0
        %584 = vmatpush1.bf16.xpose.msra.mxu0 0
        %585 = vmatprep.subr.bf16.mxu0 0
        %586 = vmatpush1.bf16.xpose.msra.mxu0 0
        %587 = vmatprep.subr.bf16.mxu0 0
        %588 = vmatpush1.bf16.xpose.msra.mxu0 0
        %589 = vmatprep.subr.bf16.mxu0 0
        %590 = vmatpush1.bf16.xpose.msra.mxu0 0
        %591 = vmatprep.subr.bf16.mxu0 0
        %592 = vmatpush1.bf16.xpose.msra.mxu0 0
        %593 = vmatprep.subr.bf16.mxu0 0
        %594 = vmatpush1.bf16.xpose.msra.mxu0 0
        %595 = vmatprep.subr.bf16.mxu0 0
        %596 = vmatpush1.bf16.xpose.msra.mxu0 0
        %597 = vmatprep.mubr.bf16.mxu0 0
        %598 = vmatmul.mubr.bf16.gmra.mrb[0].mxu0 %v560
        %v599 = vpop.f32.mrb[0].mxu0
        %v600 = vadd.f32 0.0, %v599
        %v601 = vpop.f32.mrb[0].mxu0
        %v602 = vpop.f32.mrb[0].mxu0
        %v603 = vadd.f32 0.0, %v602
        %v604 = vpop.f32.mrb[0].mxu0
        %605 = vdwg.mxu0
        %v606 = vsel %vm309, %v600, -inf
        %607 = vmax.xlane.f32.xlu0 %v606
        %v608 = vpop.xlane.xlu0 %607
        %v609 = vsel %vm309, %v603, -inf
        %610 = vmax.xlane.f32.xlu0 %v609
        %v611 = vpop.xlane.xlu0 %610
        %v612 = vsub.f32 %v600, %v608
        %v613 = vsub.f32 %v603, %v611
        %v614 = vmul.f32 %v612, 1.442695
        %v615 = vpow.pop %v614
        %v616 = vmul.f32 %v613, 1.442695
        %v617 = vpow.pop %v616
        %v618 = vsel %vm309, %v615, 0.0
        %619 = vadd.xlane.f32.xlu0 %v618
        %v620 = vpop.xlane.xlu0 %619
        %v621 = vsel %vm309, %v617, 0.0
        %622 = vadd.xlane.f32.xlu0 %v621
        %v623 = vpop.xlane.xlu0 %622
        %v624 = vpack.c.bf16 %v617, %v615
        %625 = vrot.lane.b32.xlu0 %v305, 96
        %v626 = vpop.permute.xlu0 %625
        %v629 = vsel %vm309, %v624, 0
        %631 = vmatprep.subr.bf16.mxu0 0
        %632 = vmatpush1.bf16.msra.mxu0 %v626
        %633 = vmatprep.subr.bf16.mxu0 0
        %634 = vmatpush1.bf16.msra.mxu0 0
        %635 = vmatprep.subr.bf16.mxu0 0
        %636 = vmatpush1.bf16.msra.mxu0 0
        %637 = vmatprep.subr.bf16.mxu0 0
        %638 = vmatpush1.bf16.msra.mxu0 0
        %639 = vmatprep.subr.bf16.mxu0 0
        %640 = vmatpush1.bf16.msra.mxu0 0
        %641 = vmatprep.subr.bf16.mxu0 0
        %642 = vmatpush1.bf16.msra.mxu0 0
        %643 = vmatprep.subr.bf16.mxu0 0
        %644 = vmatpush1.bf16.msra.mxu0 0
        %645 = vmatprep.subr.bf16.mxu0 0
        %646 = vmatpush1.bf16.msra.mxu0 0
        %647 = vmatprep.subr.bf16.mxu0 0
        %648 = vmatpush1.bf16.msra.mxu0 0
        %649 = vmatprep.subr.bf16.mxu0 0
        %650 = vmatpush1.bf16.msra.mxu0 0
        %651 = vmatprep.subr.bf16.mxu0 0
        %652 = vmatpush1.bf16.msra.mxu0 0
        %653 = vmatprep.subr.bf16.mxu0 0
        %654 = vmatpush1.bf16.msra.mxu0 0
        %655 = vmatprep.subr.bf16.mxu0 0
        %656 = vmatpush1.bf16.msra.mxu0 0
        %657 = vmatprep.subr.bf16.mxu0 0
        %658 = vmatpush1.bf16.msra.mxu0 0
        %659 = vmatprep.subr.bf16.mxu0 0
        %660 = vmatpush1.bf16.msra.mxu0 0
        %661 = vmatprep.subr.bf16.mxu0 0
        %662 = vmatpush1.bf16.msra.mxu0 0
        %663 = vmatprep.mubr.bf16.mxu0 0
        %664 = vmatmul.mubr.bf16.gmra.mrb[0].mxu0 %v629
        %v665 = vpop.f32.mrb[0].mxu0
        %v666 = vadd.f32 0.0, %v665
        %v667 = vpop.f32.mrb[0].mxu0
        %v668 = vpop.f32.mrb[0].mxu0
        %v669 = vadd.f32 0.0, %v668
        %v670 = vpop.f32.mrb[0].mxu0
        %671 = vdwg.mxu0
        %v672 = vrcp.pop %v620
        %v673 = vrcp.pop %v623
        %v674 = vmul.f32 %v666, %v672
        %v675 = vmul.f32 %v669, %v673
        %v676 = vpack.c.bf16 %v675, %v674
        %678 = vrot.lane.b32.xlu0 %v676, 32
        %v679 = vpop.permute.xlu0 %678
        %vm681 = vcmask 392448
        %682 = vst.msk [vmem:[#allocation2] sm:$0xff] %vm681, %v679
        %683 = vrot.lane.b32.xlu0 %v304, 80
        %v684 = vpop.permute.xlu0 %683
        %685 = vrot.lane.b32.xlu0 %v304, 16
        %v686 = vpop.permute.xlu0 %685
        %v688 = vsel %vm309, %v684, 0
        %v691 = vsel %vm309, %v686, 0
        %693 = vmatprep.subr.bf16.mxu0 0
        %694 = vmatpush1.bf16.xpose.msra.mxu0 %v691
        %695 = vmatprep.subr.bf16.mxu0 0
        %696 = vmatpush1.bf16.xpose.msra.mxu0 0
        %697 = vmatprep.subr.bf16.mxu0 0
        %698 = vmatpush1.bf16.xpose.msra.mxu0 0
        %699 = vmatprep.subr.bf16.mxu0 0
        %700 = vmatpush1.bf16.xpose.msra.mxu0 0
        %701 = vmatprep.subr.bf16.mxu0 0
        %702 = vmatpush1.bf16.xpose.msra.mxu0 0
        %703 = vmatprep.subr.bf16.mxu0 0
        %704 = vmatpush1.bf16.xpose.msra.mxu0 0
        %705 = vmatprep.subr.bf16.mxu0 0
        %706 = vmatpush1.bf16.xpose.msra.mxu0 0
        %707 = vmatprep.subr.bf16.mxu0 0
        %708 = vmatpush1.bf16.xpose.msra.mxu0 0
        %709 = vmatprep.subr.bf16.mxu0 0
        %710 = vmatpush1.bf16.xpose.msra.mxu0 0
        %711 = vmatprep.subr.bf16.mxu0 0
        %712 = vmatpush1.bf16.xpose.msra.mxu0 0
        %713 = vmatprep.subr.bf16.mxu0 0
        %714 = vmatpush1.bf16.xpose.msra.mxu0 0
        %715 = vmatprep.subr.bf16.mxu0 0
        %716 = vmatpush1.bf16.xpose.msra.mxu0 0
        %717 = vmatprep.subr.bf16.mxu0 0
        %718 = vmatpush1.bf16.xpose.msra.mxu0 0
        %719 = vmatprep.subr.bf16.mxu0 0
        %720 = vmatpush1.bf16.xpose.msra.mxu0 0
        %721 = vmatprep.subr.bf16.mxu0 0
        %722 = vmatpush1.bf16.xpose.msra.mxu0 0
        %723 = vmatprep.subr.bf16.mxu0 0
        %724 = vmatpush1.bf16.xpose.msra.mxu0 0
        %725 = vmatprep.mubr.bf16.mxu0 0
        %726 = vmatmul.mubr.bf16.gmra.mrb[0].mxu0 %v688
        %v727 = vpop.f32.mrb[0].mxu0
        %v728 = vadd.f32 0.0, %v727
        %v729 = vpop.f32.mrb[0].mxu0
        %v730 = vpop.f32.mrb[0].mxu0
        %v731 = vadd.f32 0.0, %v730
        %v732 = vpop.f32.mrb[0].mxu0
        %733 = vdwg.mxu0
        %v734 = vsel %vm309, %v728, -inf
        %735 = vmax.xlane.f32.xlu0 %v734
        %v736 = vpop.xlane.xlu0 %735
        %v737 = vsel %vm309, %v731, -inf
        %738 = vmax.xlane.f32.xlu0 %v737
        %v739 = vpop.xlane.xlu0 %738
        %v740 = vsub.f32 %v728, %v736
        %v741 = vsub.f32 %v731, %v739
        %v742 = vmul.f32 %v740, 1.442695
        %v743 = vpow.pop %v742
        %v744 = vmul.f32 %v741, 1.442695
        %v745 = vpow.pop %v744
        %v746 = vsel %vm309, %v743, 0.0
        %747 = vadd.xlane.f32.xlu0 %v746
        %v748 = vpop.xlane.xlu0 %747
        %v749 = vsel %vm309, %v745, 0.0
        %750 = vadd.xlane.f32.xlu0 %v749
        %v751 = vpop.xlane.xlu0 %750
        %v752 = vpack.c.bf16 %v745, %v743
        %753 = vrot.lane.b32.xlu0 %v305, 80
        %v754 = vpop.permute.xlu0 %753
        %v757 = vsel %vm309, %v752, 0
        %759 = vmatprep.subr.bf16.mxu0 0
        %760 = vmatpush1.bf16.msra.mxu0 %v754
        %761 = vmatprep.subr.bf16.mxu0 0
        %762 = vmatpush1.bf16.msra.mxu0 0
        %763 = vmatprep.subr.bf16.mxu0 0
        %764 = vmatpush1.bf16.msra.mxu0 0
        %765 = vmatprep.subr.bf16.mxu0 0
        %766 = vmatpush1.bf16.msra.mxu0 0
        %767 = vmatprep.subr.bf16.mxu0 0
        %768 = vmatpush1.bf16.msra.mxu0 0
        %769 = vmatprep.subr.bf16.mxu0 0
        %770 = vmatpush1.bf16.msra.mxu0 0
        %771 = vmatprep.subr.bf16.mxu0 0
        %772 = vmatpush1.bf16.msra.mxu0 0
        %773 = vmatprep.subr.bf16.mxu0 0
        %774 = vmatpush1.bf16.msra.mxu0 0
        %775 = vmatprep.subr.bf16.mxu0 0
        %776 = vmatpush1.bf16.msra.mxu0 0
        %777 = vmatprep.subr.bf16.mxu0 0
        %778 = vmatpush1.bf16.msra.mxu0 0
        %779 = vmatprep.subr.bf16.mxu0 0
        %780 = vmatpush1.bf16.msra.mxu0 0
        %781 = vmatprep.subr.bf16.mxu0 0
        %782 = vmatpush1.bf16.msra.mxu0 0
        %783 = vmatprep.subr.bf16.mxu0 0
        %784 = vmatpush1.bf16.msra.mxu0 0
        %785 = vmatprep.subr.bf16.mxu0 0
        %786 = vmatpush1.bf16.msra.mxu0 0
        %787 = vmatprep.subr.bf16.mxu0 0
        %788 = vmatpush1.bf16.msra.mxu0 0
        %789 = vmatprep.subr.bf16.mxu0 0
        %790 = vmatpush1.bf16.msra.mxu0 0
        %791 = vmatprep.mubr.bf16.mxu0 0
        %792 = vmatmul.mubr.bf16.gmra.mrb[0].mxu0 %v757
        %v793 = vpop.f32.mrb[0].mxu0
        %v794 = vadd.f32 0.0, %v793
        %v795 = vpop.f32.mrb[0].mxu0
        %v796 = vpop.f32.mrb[0].mxu0
        %v797 = vadd.f32 0.0, %v796
        %v798 = vpop.f32.mrb[0].mxu0
        %799 = vdwg.mxu0
        %v800 = vrcp.pop %v748
        %v801 = vrcp.pop %v751
        %v802 = vmul.f32 %v794, %v800
        %v803 = vmul.f32 %v797, %v801
        %v804 = vpack.c.bf16 %v803, %v802
        %806 = vrot.lane.b32.xlu0 %v804, 48
        %v807 = vpop.permute.xlu0 %806
        %vm809 = vcmask 523648
        %810 = vst.msk [vmem:[#allocation2] sm:$0xff] %vm809, %v807
        %v811 = vld [vmem:[#allocation2] sm:$0xff]
        %v813 = vlaneseq
        %v814 = vshrl.u32 %v813, 7
        %v815 = vsub.s32 0, %v814
        %v816 = vrot.slane %v216, %v815
        %v826 = vunpack.c.l.b16 %v208
        %v827 = vunpack.c.l.b16 %v209
        %v828 = vunpack.c.l.b16 %v210
        %v829 = vunpack.c.l.b16 %v211
        %v830 = vunpack.c.l.b16 %v212
        %v831 = vunpack.c.l.b16 %v213
        %v832 = vunpack.c.l.b16 %v214
        %v833 = vunpack.c.l.b16 %v215
        %v834 = vpack.c.b16 %v827, %v826
        %v835 = vpack.c.b16 %v829, %v828
        %v836 = vpack.c.b16 %v831, %v830
        %v837 = vpack.c.b16 %v833, %v832
        %v843 = vsel %vm257, %v811, 0
        %845 = vmatprep.subr.bf16.mxu0 0
        %846 = vmatpush1.bf16.msra.mxu0 %v834
        %847 = vmatprep.subr.bf16.mxu0 0
        %848 = vmatpush1.bf16.msra.mxu0 %v835
        %849 = vmatprep.subr.bf16.mxu0 0
        %850 = vmatpush1.bf16.msra.mxu0 %v836
        %851 = vmatprep.subr.bf16.mxu0 0
        %852 = vmatpush1.bf16.msra.mxu0 %v837
        %853 = vmatprep.subr.bf16.mxu0 0
        %854 = vmatpush1.bf16.msra.mxu0 0
        %855 = vmatprep.subr.bf16.mxu0 0
        %856 = vmatpush1.bf16.msra.mxu0 0
        %857 = vmatprep.subr.bf16.mxu0 0
        %858 = vmatpush1.bf16.msra.mxu0 0
        %859 = vmatprep.subr.bf16.mxu0 0
        %860 = vmatpush1.bf16.msra.mxu0 0
        %861 = vmatprep.subr.bf16.mxu0 0
        %862 = vmatpush1.bf16.msra.mxu0 0
        %863 = vmatprep.subr.bf16.mxu0 0
        %864 = vmatpush1.bf16.msra.mxu0 0
        %865 = vmatprep.subr.bf16.mxu0 0
        %866 = vmatpush1.bf16.msra.mxu0 0
        %867 = vmatprep.subr.bf16.mxu0 0
        %868 = vmatpush1.bf16.msra.mxu0 0
        %869 = vmatprep.subr.bf16.mxu0 0
        %870 = vmatpush1.bf16.msra.mxu0 0
        %871 = vmatprep.subr.bf16.mxu0 0
        %872 = vmatpush1.bf16.msra.mxu0 0
        %873 = vmatprep.subr.bf16.mxu0 0
        %874 = vmatpush1.bf16.msra.mxu0 0
        %875 = vmatprep.subr.bf16.mxu0 0
        %876 = vmatpush1.bf16.msra.mxu0 0
        %877 = vmatprep.mubr.bf16.mxu0 0
        %878 = vmatmul.mubr.bf16.gmra.mrb[0].mxu0 %v843
        %v879 = vpop.f32.mrb[0].mxu0
        %v880 = vadd.f32 %v816, %v879
        %v881 = vpop.f32.mrb[0].mxu0
        %v882 = vpop.f32.mrb[0].mxu0
        %v883 = vadd.f32 %v816, %v882
        %v884 = vpop.f32.mrb[0].mxu0
        %885 = vdwg.mxu0
        %886 = vst.msk [vmem:[%s190] sm:$0xff] %vm257, %v880
        %887 = vst.msk [vmem:[%s190 + $0x8] sm:$0xff] %vm257, %v883
        %s888 = sand.u32 %s115, 1
        %s889 = scalar_lea.sflag [#allocation4], %s888
        %s890 = sand.u32 %s115, 1
        %s891 = smul.addr %s890, 16
        %s892 = scalar_lea.vmem [#allocation3], %s891
        // Predicated region
        $region37: #{attention_forward.1} parent=35 // pred_check
          %p893 = pneg %p125
        $region38: #{attention_forward.1} parent=35 // pred_check_branch
          %895 = sbr.rel (%p893) target = $region40
        $region39: #{attention_forward.1} parent=35 // pred_region
          %s897 = ssub.s32 256, 256
          %898 = vsyncadd %s889, %s897
          %s899 = smul.addr %s18, 2
          %s900 = smul.addr %s899, 128
          %s901 = scalar_lea.hbm %s4, %s900
          %s902 = sshll.u32 %s892, 4
          %s903 = int_to_ptr.vmem [resolvable:$true] %s902
          %908 = dma.vmem_to_hbm [thread:$0]  %s903, 256, %s901, %s889, 128, 128, 8
        $region40: #{attention_forward.1} parent=35 // pred_fallthru
          _
      $region36: #{attention_forward.1} parent=5 // pred_fallthru
        _
      %p909 = scmp.le.s32.totalorder 2, %s13
      // Predicated region
      $region41: #{attention_forward.1} parent=5 // pred_check
        %p910 = pneg %p909
      $region42: #{attention_forward.1} parent=5 // pred_check_branch
        %912 = sbr.rel (%p910) target = $region44
      $region43: #{attention_forward.1} parent=5 // pred_region
        %s913 = ssub.s32 %s13, 2
        // Predicated region
        $region45: #{attention_forward.1} parent=43 // pred_check
          %p914 = pneg %p131
        $region46: #{attention_forward.1} parent=43 // pred_check_branch
          %916 = sbr.rel (%p914) target = $region48
        $region47: #{attention_forward.1} parent=43 // pred_region
          %s917 = sand.u32 %s116, 1
          %s918 = scalar_lea.sflag [#allocation4], %s917
          %s919 = sand.u32 %s116, 1
          %s920 = smul.addr %s919, 16
          %s921 = scalar_lea.vmem [#allocation3], %s920
          %922 = dma.done %s918, 256
        $region48: #{attention_forward.1} parent=43 // pred_fallthru
          _
      $region44: #{attention_forward.1} parent=5 // pred_fallthru
        _
    $region6: #{attention_forward.1} parent=1 // loop_footer
      %s17 = sadd.s32 1, %s13
    $region7: #{attention_forward.1} parent=1 // loop_footer_branch
      %12 = sbr.rel target = $region3
    $region8: #{attention_forward.1} parent=1 // loop_exit
      _
    %923 = vsyncpa [#allocation4], 1
    %s924 = scalar_lea.sflag [#allocation4], 1
    %925 = vsyncpa %s924, 1

</llo_original>
